<compile_context>
chip_gen: v7x
topology: tpu7x:2x2x1
jax: 0.10.0
libtpu: 0.0.40
codegen_flags: <defaults>
</compile_context>

<pallas_src>
import functools

import jax
import jax.numpy as jnp
from jax import lax
from jax.experimental import pallas as pl
from jax.experimental.pallas import tpu as pltpu

LN_EPS = 1e-5


def _round_up(n, m):
    return ((n + m - 1) // m) * m


def _bias_tanh_layernorm(h, b, g, beta, h_out_real):
    """Fused epilogue: bias add, tanh, LayerNorm with one-pass statistics.

    `h_out_real` is the unpadded feature width: padded columns are exactly
    zero after tanh (zero weight columns + zero bias), so summing over the
    padded width and dividing by the real width gives the correct mean/var.
    """
    h = h + b
    # Dropout: identity at inference time.
    # TODO(synk): training-mode dropout (pltpu.prng_*) not implemented.
    h = jnp.tanh(h)
    inv_n = jnp.float32(1.0 / h_out_real)
    s1 = jnp.sum(h, axis=-1, keepdims=True) * inv_n        # E[h]
    s2 = jnp.sum(h * h, axis=-1, keepdims=True) * inv_n    # E[h^2]
    var = jnp.maximum(s2 - s1 * s1, 0.0)                   # one-pass variance
    h = (h - s1) * lax.rsqrt(var + LN_EPS)
    return h * g + beta


def dnn_kernel_resident(x_ref, wt_ref, b_ref, g_ref, beta_ref, o_ref, *,
                        h_out_real):
    # x_ref:    (tn, H_in_p)     bf16 activation row tile (pipelined over grid)
    # wt_ref:   (H_in_p, H_out_p) bf16 W^T, resident in VMEM (no pipelining)
    # b/g/beta: (1, H_out_p)     f32, resident
    h = jnp.dot(x_ref[...], wt_ref[...], preferred_element_type=jnp.float32)
    h = _bias_tanh_layernorm(h, b_ref[...], g_ref[...], beta_ref[...],
                             h_out_real)
    o_ref[...] = h.astype(o_ref.dtype)


def dnn_kernel_stream_k(x_ref, wt_ref, b_ref, g_ref, beta_ref, o_ref, acc_ref,
                        *, h_out_real):
    # Weight streamed over the K (H_in) grid axis; f32 accumulator scratch.
    k = pl.program_id(1)

    @pl.when(k == 0)
    def _():
        acc_ref[...] = jnp.zeros_like(acc_ref)

    acc_ref[...] += jnp.dot(x_ref[...], wt_ref[...],
                            preferred_element_type=jnp.float32)

    @pl.when(k == pl.num_programs(1) - 1)
    def _():
        h = _bias_tanh_layernorm(acc_ref[...], b_ref[...], g_ref[...],
                                 beta_ref[...], h_out_real)
        o_ref[...] = h.astype(o_ref.dtype)


def dnn_forward(x, weight, bias, ln_gamma, ln_beta, *, row_tile=None,
                k_tile=512):
    """DNN.forward: LayerNorm(tanh(dropout(x @ W^T + b))), eval-mode dropout.

    x: (..., H_in).  weight: (H_out, H_in) (nn.Linear layout).
    bias / ln_gamma / ln_beta: (H_out,).  Matmul runs in bf16 with f32
    accumulation; tanh / LayerNorm stay in f32.
    """
    *lead, H_in = x.shape
    H_out = weight.shape[0]

    # ---------------- hardware budget ----------------
    try:
        vmem_cap = int(getattr(pltpu.get_tpu_info(), "vmem_capacity_bytes",
                               64 * 2**20))
    except Exception:  # pragma: no cover - defensive, conservative default
        vmem_cap = 64 * 2**20            # v7x per-TensorCore capacity

    if row_tile is None:
        # 512-row tiles on 128 MiB-VMEM parts (v5e/v6e), 256 on v7x (64 MiB).
        row_tile = 512 if vmem_cap >= 96 * 2**20 else 256

    # ---------------- lane-dense padding ----------------
    H_in_p = _round_up(H_in, 128)
    H_out_p = _round_up(H_out, 128)

    x2 = x.reshape(-1, H_in)
    N = x2.shape[0]

    # bf16 activations: row tile must be a multiple of 16 (sublane packing).
    tn = min(row_tile, _round_up(N, 16))
    # Give the v7x megacore at least two row-grid steps when N allows it.
    if _round_up(N, tn) // tn < 2 and N > 16:
        tn = min(tn, _round_up((N + 1) // 2, 16))
    N_pad = _round_up(N, tn)

    x2 = x2.astype(jnp.bfloat16)
    if N_pad != N or H_in_p != H_in:
        x2 = jnp.pad(x2, ((0, N_pad - N), (0, H_in_p - H_in)))

    w_t = weight.T.astype(jnp.bfloat16)                     # (H_in, H_out)
    if H_in_p != H_in or H_out_p != H_out:
        w_t = jnp.pad(w_t, ((0, H_in_p - H_in), (0, H_out_p - H_out)))
    pad_o = (0, H_out_p - H_out)
    b2 = jnp.pad(bias.astype(jnp.float32), pad_o).reshape(1, H_out_p)
    g2 = jnp.pad(ln_gamma.astype(jnp.float32), pad_o).reshape(1, H_out_p)
    be2 = jnp.pad(ln_beta.astype(jnp.float32), pad_o).reshape(1, H_out_p)

    param_spec = pl.BlockSpec(memory_space=pltpu.MemorySpace.VMEM)

    # ---------------- VMEM accounting ----------------
    small_param_bytes = (b2.size + g2.size + be2.size) * 4
    weight_bytes = w_t.size * 2
    # double-buffered bf16 input + f32 output tiles, plus f32 intermediates
    # (h / tanh / LN temps) that live alongside the output tile.
    act_bytes = (2 * tn * H_in_p * 2 +
                 2 * tn * H_out_p * 4 +
                 4 * tn * H_out_p * 4)
    margin = 2 << 20
    cap = max(24 * 2**20, int(0.85 * vmem_cap))

    resident_need = weight_bytes + small_param_bytes + act_bytes + margin
    use_resident = resident_need <= int(0.55 * vmem_cap)

    grid_rows = N_pad // tn
    out_shape = jax.ShapeDtypeStruct((N_pad, H_out_p), jnp.float32)

    if use_resident:
        kern = functools.partial(dnn_kernel_resident, h_out_real=H_out)
        vmem_limit = int(min(cap, max(resident_need, 32 * 2**20)))
        out2 = pl.pallas_call(
            kern,
            out_shape=out_shape,
            grid_spec=pltpu.PrefetchScalarGridSpec(
                num_scalar_prefetch=0,
                grid=(grid_rows,),
                in_specs=[
                    pl.BlockSpec((tn, H_in_p), lambda i: (i, 0)),  # activations
                    param_spec,                                    # W^T (bf16)
                    param_spec,                                    # bias
                    param_spec,                                    # LN gamma
                    param_spec,                                    # LN beta
                ],
                out_specs=pl.BlockSpec((tn, H_out_p), lambda i: (i, 0)),
            ),
            compiler_params=pltpu.CompilerParams(
                dimension_semantics=("parallel",),
                vmem_limit_bytes=vmem_limit),
        )(x2, w_t, b2, g2, be2)
    else:
        # Weight too large to keep resident (e.g. v7x 64 MiB VMEM): stream it
        # over the K axis; row tile keeps the full H_out so LN is unchanged.
        tk = _round_up(min(k_tile, H_in_p), 128)
        K_pad = _round_up(H_in_p, tk)
        if K_pad != H_in_p:
            x2 = jnp.pad(x2, ((0, 0), (0, K_pad - H_in_p)))
            w_t = jnp.pad(w_t, ((0, K_pad - H_in_p), (0, 0)))
        stream_need = (small_param_bytes +
                       2 * tk * H_out_p * 2 +     # double-buffered W^T tile
                       2 * tn * tk * 2 +          # double-buffered input tile
                       2 * tn * H_out_p * 4 +     # output tiles
                       5 * tn * H_out_p * 4 +     # acc scratch + temps
                       margin)
        vmem_limit = int(min(cap, max(stream_need, 32 * 2**20)))
        kern = functools.partial(dnn_kernel_stream_k, h_out_real=H_out)
        out2 = pl.pallas_call(
            kern,
            out_shape=out_shape,
            grid_spec=pltpu.PrefetchScalarGridSpec(
                num_scalar_prefetch=0,
                grid=(grid_rows, K_pad // tk),
                in_specs=[
                    pl.BlockSpec((tn, tk), lambda i, k: (i, k)),       # x
                    pl.BlockSpec((tk, H_out_p), lambda i, k: (k, 0)),  # W^T
                    param_spec,                                        # bias
                    param_spec,                                        # gamma
                    param_spec,                                        # beta
                ],
                out_specs=pl.BlockSpec((tn, H_out_p), lambda i, k: (i, 0)),
                scratch_shapes=[pltpu.VMEM((tn, H_out_p), jnp.float32)],
            ),
            compiler_params=pltpu.CompilerParams(
                dimension_semantics=("parallel", "arbitrary"),
                vmem_limit_bytes=vmem_limit),
        )(x2, w_t, b2, g2, be2)

    out2 = out2[:N, :H_out]
    return out2.reshape(*lead, H_out)


def dnn_reference(x, weight, bias, ln_gamma, ln_beta):
    """Pure-JAX f32 reference of the PyTorch DNN forward (eval mode)."""
    h = jnp.einsum("...i,oi->...o", x, weight) + bias
    h = jnp.tanh(h)
    mu = jnp.mean(h, axis=-1, keepdims=True)
    var = jnp.mean((h - mu) ** 2, axis=-1, keepdims=True)
    h = (h - mu) / jnp.sqrt(var + LN_EPS)
    return h * ln_gamma + ln_beta


if __name__ == "__main__":
    key = jax.random.PRNGKey(0)

    # --- test 1: lane-dense shapes (multiples of 128) ---
    B, S = 2, 8
    IN_SIZE, OUT_SIZE = 128, 128
    kx, kw, kb = jax.random.split(key, 3)
    x = jax.random.normal(kx, (B, S, IN_SIZE), jnp.float32)
    weight = jax.random.normal(kw, (OUT_SIZE, IN_SIZE), jnp.float32) * 0.1
    bias = jax.random.normal(kb, (OUT_SIZE,), jnp.float32) * 0.1
    ln_gamma = jnp.ones((OUT_SIZE,), jnp.float32) + 0.01 * jnp.arange(
        OUT_SIZE, dtype=jnp.float32) / OUT_SIZE
    ln_beta = 0.01 * jnp.arange(OUT_SIZE, dtype=jnp.float32) / OUT_SIZE

    out = jax.block_until_ready(dnn_forward(x, weight, bias, ln_gamma, ln_beta))
    ref = dnn_reference(x, weight, bias, ln_gamma, ln_beta)
    assert out.shape == (B, S, OUT_SIZE)
    # bf16 matmul (f32 accumulation) vs f32 reference -> modest tolerance.
    assert jnp.allclose(out, ref, atol=3e-2, rtol=3e-2), "mismatch (dense case)"

    # --- test 2: ragged widths exercise the lane-dense padding path ---
    IN2, OUT2 = 100, 96
    kx2, kw2, kb2 = jax.random.split(jax.random.PRNGKey(1), 3)
    x2 = jax.random.normal(kx2, (3, 5, IN2), jnp.float32)
    w2 = jax.random.normal(kw2, (OUT2, IN2), jnp.float32) * 0.1
    b2 = jax.random.normal(kb2, (OUT2,), jnp.float32) * 0.1
    g2 = jnp.ones((OUT2,), jnp.float32)
    be2 = jnp.zeros((OUT2,), jnp.float32)

    out2 = jax.block_until_ready(dnn_forward(x2, w2, b2, g2, be2))
    ref2 = dnn_reference(x2, w2, b2, g2, be2)
    assert out2.shape == (3, 5, OUT2)
    assert jnp.allclose(out2, ref2, atol=3e-2, rtol=3e-2), "mismatch (ragged case)"

    print("KERNEL_OK")
</pallas_src>

<mosaic_0001>
module attributes {stable_mosaic.version = 11 : i64} {
  func.func @dnn_kernel_resident(%arg0: i32, %arg1: memref<16x128xbf16, #tpu.memory_space<vmem>>, %arg2: memref<128x128xbf16, #tpu.memory_space<vmem>>, %arg3: memref<1x128xf32, #tpu.memory_space<vmem>>, %arg4: memref<1x128xf32, #tpu.memory_space<vmem>>, %arg5: memref<1x128xf32, #tpu.memory_space<vmem>>, %arg6: memref<16x128xf32, #tpu.memory_space<vmem>>) attributes {dimension_semantics = [#tpu.dimension_semantics<parallel>], iteration_bounds = array<i64: 1>, scalar_prefetch = 0 : i64, scratch_operands = 0 : i64, tpu.core_type = #tpu.core_type<tc>, window_params = [{transform_indices = @transform_0, window_bounds = array<i64: 16, 128>}, {pipeline_mode = #tpu.pipeline_mode<synchronous>, transform_indices = @transform_1, window_bounds = array<i64: 128, 128>}, {pipeline_mode = #tpu.pipeline_mode<synchronous>, transform_indices = @transform_2, window_bounds = array<i64: 1, 128>}, {pipeline_mode = #tpu.pipeline_mode<synchronous>, transform_indices = @transform_3, window_bounds = array<i64: 1, 128>}, {pipeline_mode = #tpu.pipeline_mode<synchronous>, transform_indices = @transform_4, window_bounds = array<i64: 1, 128>}, {transform_indices = @transform_5, window_bounds = array<i64: 16, 128>}]} {
    %c0 = arith.constant 0 : index
    %c0_0 = arith.constant 0 : index
    %0 = vector.load %arg1[%c0, %c0_0] : memref<16x128xbf16, #tpu.memory_space<vmem>>, vector<16x128xbf16>
    %c0_1 = arith.constant 0 : index
    %c0_2 = arith.constant 0 : index
    %1 = vector.load %arg2[%c0_1, %c0_2] : memref<128x128xbf16, #tpu.memory_space<vmem>>, vector<128x128xbf16>
    %cst = arith.constant dense<0.000000e+00> : vector<16x128xf32>
    %2 = tpu.matmul %0, %1, %cst {dimension_numbers = #tpu.dot_dimension_numbers<[1], [0], [0], [1], [0, 0, 1, 1], [], []>} : vector<16x128xbf16>, vector<128x128xbf16>, vector<16x128xf32> -> vector<16x128xf32>
    %c0_3 = arith.constant 0 : index
    %c0_4 = arith.constant 0 : index
    %3 = vector.load %arg3[%c0_3, %c0_4] : memref<1x128xf32, #tpu.memory_space<vmem>>, vector<1x128xf32>
    %c0_5 = arith.constant 0 : index
    %c0_6 = arith.constant 0 : index
    %4 = vector.load %arg4[%c0_5, %c0_6] : memref<1x128xf32, #tpu.memory_space<vmem>>, vector<1x128xf32>
    %c0_7 = arith.constant 0 : index
    %c0_8 = arith.constant 0 : index
    %5 = vector.load %arg5[%c0_7, %c0_8] : memref<1x128xf32, #tpu.memory_space<vmem>>, vector<1x128xf32>
    %6 = vector.broadcast %3 : vector<1x128xf32> to vector<16x128xf32>
    %7 = arith.addf %2, %6 : vector<16x128xf32>
    %8 = math.tanh %7 : vector<16x128xf32>
    %cst_9 = arith.constant dense<0.000000e+00> : vector<16xf32>
    %9 = vector.multi_reduction <add>, %8, %cst_9 [1] : vector<16x128xf32> to vector<16xf32>
    %10 = vector.shape_cast %9 : vector<16xf32> to vector<16x1xf32>
    %cst_10 = arith.constant 7.812500e-03 : f32
    %11 = vector.broadcast %cst_10 : f32 to vector<16x1xf32>
    %12 = arith.mulf %10, %11 : vector<16x1xf32>
    %13 = arith.mulf %8, %8 : vector<16x128xf32>
    %cst_11 = arith.constant dense<0.000000e+00> : vector<16xf32>
    %14 = vector.multi_reduction <add>, %13, %cst_11 [1] : vector<16x128xf32> to vector<16xf32>
    %15 = vector.shape_cast %14 : vector<16xf32> to vector<16x1xf32>
    %cst_12 = arith.constant 7.812500e-03 : f32
    %16 = vector.broadcast %cst_12 : f32 to vector<16x1xf32>
    %17 = arith.mulf %15, %16 : vector<16x1xf32>
    %18 = arith.mulf %12, %12 : vector<16x1xf32>
    %19 = arith.subf %17, %18 : vector<16x1xf32>
    %cst_13 = arith.constant 0.000000e+00 : f32
    %20 = vector.broadcast %cst_13 : f32 to vector<16x1xf32>
    %21 = arith.maximumf %19, %20 : vector<16x1xf32>
    %22 = vector.broadcast %12 : vector<16x1xf32> to vector<16x128xf32>
    %23 = arith.subf %8, %22 : vector<16x128xf32>
    %cst_14 = arith.constant 9.99999974E-6 : f32
    %24 = vector.broadcast %cst_14 : f32 to vector<16x1xf32>
    %25 = arith.addf %21, %24 : vector<16x1xf32>
    %26 = math.rsqrt %25 : vector<16x1xf32>
    %27 = vector.broadcast %26 : vector<16x1xf32> to vector<16x128xf32>
    %28 = arith.mulf %23, %27 : vector<16x128xf32>
    %29 = vector.broadcast %4 : vector<1x128xf32> to vector<16x128xf32>
    %30 = arith.mulf %28, %29 : vector<16x128xf32>
    %31 = vector.broadcast %5 : vector<1x128xf32> to vector<16x128xf32>
    %32 = arith.addf %30, %31 : vector<16x128xf32>
    %c0_15 = arith.constant 0 : index
    %c0_16 = arith.constant 0 : index
    %33 = vector.load %arg6[%c0_15, %c0_16] : memref<16x128xf32, #tpu.memory_space<vmem>>, vector<16x128xf32>
    tpu.vector_store %arg6[%c0_15, %c0_16], %32 {strides = array<i32>} : memref<16x128xf32, #tpu.memory_space<vmem>>, vector<16x128xf32>,
    return
  }
  func.func @transform_0(%arg0: i32) -> (i32, i32) {
    %c0_i32 = arith.constant 0 : i32
    %c0_i32_0 = arith.constant 0 : i32
    return %arg0, %c0_i32 : i32, i32
  }
  func.func @transform_1(%arg0: i32) -> (i32, i32) {
    %c0_i32 = arith.constant 0 : i32
    %c0_i32_0 = arith.constant 0 : i32
    %c0_i32_1 = arith.constant 0 : i32
    return %c0_i32, %c0_i32_0 : i32, i32
  }
  func.func @transform_2(%arg0: i32) -> (i32, i32) {
    %c0_i32 = arith.constant 0 : i32
    %c0_i32_0 = arith.constant 0 : i32
    %c0_i32_1 = arith.constant 0 : i32
    return %c0_i32, %c0_i32_0 : i32, i32
  }
  func.func @transform_3(%arg0: i32) -> (i32, i32) {
    %c0_i32 = arith.constant 0 : i32
    %c0_i32_0 = arith.constant 0 : i32
    %c0_i32_1 = arith.constant 0 : i32
    return %c0_i32, %c0_i32_0 : i32, i32
  }
  func.func @transform_4(%arg0: i32) -> (i32, i32) {
    %c0_i32 = arith.constant 0 : i32
    %c0_i32_0 = arith.constant 0 : i32
    %c0_i32_1 = arith.constant 0 : i32
    return %c0_i32, %c0_i32_0 : i32, i32
  }
  func.func @transform_5(%arg0: i32) -> (i32, i32) {
    %c0_i32 = arith.constant 0 : i32
    %c0_i32_0 = arith.constant 0 : i32
    return %arg0, %c0_i32 : i32, i32
  }
}

</mosaic_0001>

<llo_original>
// kernel: tpu_custom_call.1
$region0: #{tpu_custom_call.1}
  #allocation0 [shape = 'u32[]', space=smem, size = 0x4, offset = 0x4, fixed_abs, tag = 'smem constant byte address 0x4 - core index']
  #allocation1 [shape = 'u32[144,128]{1,0:T(1,128)}', space=vmem, size = 0x12000, scoped, tag = 'internal scratch']
  %s0 = inlined_call_operand.hbm [shape: bf16[16,128], index: 0, kind: input, shape index: {}]
  %s1 = inlined_call_operand.hbm [shape: bf16[128,128], index: 1, kind: input, shape index: {}]
  %s2 = inlined_call_operand.vmem [shape: f32[1,128], index: 2, kind: input, shape index: {}]
  %s3 = inlined_call_operand.vmem [shape: f32[1,128], index: 3, kind: input, shape index: {}]
  %s4 = inlined_call_operand.vmem [shape: f32[1,128], index: 4, kind: input, shape index: {}]
  %s5 = inlined_call_operand.hbm [shape: f32[16,128], index: 5, kind: output, shape index: {}]
  %s6 = sld [smem:[#allocation0]]
  $region38: #{tpu_custom_call.1} parent=0
    _
  %s8 = ssub.s32 1, %s6
  %s9 = scalar_select 0, %s8, %s6
  $region1: #{tpu_custom_call.1} parent=0
    #allocation2 [shape = 'u8[4096]{0}', space=vmem, size = 0x1000, scoped, tag = 'input window, operand 0, single buffered']
    #allocation3 [shape = 's32[1]{0}', space=sflag, size = 0x4, scoped, tag = 'scoped memory for tpu_custom_call.1']
    #allocation4 [shape = 's32[1]{0}', space=sflag, size = 0x4, scoped, tag = 'scoped memory for tpu_custom_call.1']
    #allocation5 [shape = 'u8[32768]{0}', space=vmem, size = 0x8000, scoped, tag = 'input window, operand 1, single buffered']
    #allocation6 [shape = 's32[1]{0}', space=sflag, size = 0x4, scoped, tag = 'scoped memory for tpu_custom_call.1']
    #allocation7 [shape = 'u8[8192]{0}', space=vmem, size = 0x2000, scoped, tag = 'output window, operand 0, single buffered']
    %10 = vsyncpa [#allocation3], 0
    %11 = vsyncpa [#allocation6], 0
    %12 = vsyncpa [#allocation4], 0
    // Predicated region
    $region2: #{tpu_custom_call.1} parent=1 // pred_check
      _
    $region3: #{tpu_custom_call.1} parent=1 // pred_check_branch
      %14 = sbr.rel (0) target = $region5
    $region4: #{tpu_custom_call.1} parent=1 // pred_region
      %s16 = ssub.s32 128, 128
      %17 = vsyncadd [#allocation3], %s16
      %s18 = sshll.u32 [#allocation2], 4
      %s19 = int_to_ptr.vmem [resolvable:$true] %s18
      %24 = dma.hbm_to_vmem [thread:$0]  %s0, 128, %s19, [#allocation3], 64, 64, 4
    $region5: #{tpu_custom_call.1} parent=1 // pred_fallthru
      _
    // Predicated region
    $region6: #{tpu_custom_call.1} parent=1 // pred_check
      _
    $region7: #{tpu_custom_call.1} parent=1 // pred_check_branch
      %26 = sbr.rel (0) target = $region9
    $region8: #{tpu_custom_call.1} parent=1 // pred_region
      %s28 = ssub.s32 1024, 1024
      %29 = vsyncadd [#allocation6], %s28
      %s30 = sshll.u32 [#allocation5], 4
      %s31 = int_to_ptr.vmem [resolvable:$true] %s30
      %36 = dma.hbm_to_vmem [thread:$0]  %s1, 1024, %s31, [#allocation6], 64, 64, 4
    $region9: #{tpu_custom_call.1} parent=1 // pred_fallthru
      _
    // Predicated region
    $region10: #{tpu_custom_call.1} parent=1 // pred_check
      _
    $region11: #{tpu_custom_call.1} parent=1 // pred_check_branch
      %38 = sbr.rel (0) target = $region13
    $region12: #{tpu_custom_call.1} parent=1 // pred_region
      _
    $region13: #{tpu_custom_call.1} parent=1 // pred_fallthru
      _
    // Predicated region
    $region14: #{tpu_custom_call.1} parent=1 // pred_check
      _
    $region15: #{tpu_custom_call.1} parent=1 // pred_check_branch
      %40 = sbr.rel (0) target = $region17
    $region16: #{tpu_custom_call.1} parent=1 // pred_region
      _
    $region17: #{tpu_custom_call.1} parent=1 // pred_fallthru
      _
    // Predicated region
    $region18: #{tpu_custom_call.1} parent=1 // pred_check
      _
    $region19: #{tpu_custom_call.1} parent=1 // pred_check_branch
      %42 = sbr.rel (0) target = $region21
    $region20: #{tpu_custom_call.1} parent=1 // pred_region
      _
    $region21: #{tpu_custom_call.1} parent=1 // pred_fallthru
      _
    // Predicated region
    $region22: #{tpu_custom_call.1} parent=1 // pred_check
      _
    $region23: #{tpu_custom_call.1} parent=1 // pred_check_branch
      %44 = sbr.rel (0) target = $region25
    $region24: #{tpu_custom_call.1} parent=1 // pred_region
      %45 = dma.done [#allocation3], 128
    $region25: #{tpu_custom_call.1} parent=1 // pred_fallthru
      _
    // Predicated region
    $region26: #{tpu_custom_call.1} parent=1 // pred_check
      _
    $region27: #{tpu_custom_call.1} parent=1 // pred_check_branch
      %47 = sbr.rel (0) target = $region29
    $region28: #{tpu_custom_call.1} parent=1 // pred_region
      %48 = dma.done [#allocation6], 1024
    $region29: #{tpu_custom_call.1} parent=1 // pred_fallthru
      _
    %v50 = vld [vmem:[#allocation2] sm:$0xf]
    %v51 = vld [vmem:[#allocation2 + $0x4] sm:$0xf]
    %v52 = vld [vmem:[#allocation5] sm:$0xf]
    %v53 = vld [vmem:[#allocation5 + $0x4] sm:$0xf]
    %v54 = vld [vmem:[#allocation5 + $0x8] sm:$0xf]
    %v55 = vld [vmem:[#allocation5 + $0xc] sm:$0xf]
    %v56 = vld [vmem:[#allocation5 + $0x10] sm:$0xf]
    %v57 = vld [vmem:[#allocation5 + $0x14] sm:$0xf]
    %v58 = vld [vmem:[#allocation5 + $0x18] sm:$0xf]
    %v59 = vld [vmem:[#allocation5 + $0x1c] sm:$0xf]
    %v60 = vld [vmem:[#allocation5 + $0x20] sm:$0xf]
    %v61 = vld [vmem:[#allocation5 + $0x24] sm:$0xf]
    %v62 = vld [vmem:[#allocation5 + $0x28] sm:$0xf]
    %v63 = vld [vmem:[#allocation5 + $0x2c] sm:$0xf]
    %v64 = vld [vmem:[#allocation5 + $0x30] sm:$0xf]
    %v65 = vld [vmem:[#allocation5 + $0x34] sm:$0xf]
    %v66 = vld [vmem:[#allocation5 + $0x38] sm:$0xf]
    %v67 = vld [vmem:[#allocation5 + $0x3c] sm:$0xf]
    %v68 = vld [vmem:[%s2] sm:$0x1]
    %v69 = vld [vmem:[%s3] sm:$0x1]
    %v70 = vld [vmem:[%s4] sm:$0x1]
    %v72 = vlaneseq
    %v73 = vshrl.u32 %v72, 7
    %v74 = vsub.s32 0, %v73
    %v75 = vrot.slane %v68, %v74
    %v79 = vunpack.c.l.b16 %v50
    %v80 = vunpack.c.l.b16 %v51
    %v81 = vpack.c.b16 %v80, %v79
    %v99 = vunpack.c.l.b16 %v52
    %v100 = vunpack.c.l.b16 %v53
    %v101 = vunpack.c.l.b16 %v54
    %v102 = vunpack.c.l.b16 %v55
    %v103 = vunpack.c.l.b16 %v56
    %v104 = vunpack.c.l.b16 %v57
    %v105 = vunpack.c.l.b16 %v58
    %v106 = vunpack.c.l.b16 %v59
    %v107 = vunpack.c.l.b16 %v60
    %v108 = vunpack.c.l.b16 %v61
    %v109 = vunpack.c.l.b16 %v62
    %v110 = vunpack.c.l.b16 %v63
    %v111 = vunpack.c.l.b16 %v64
    %v112 = vunpack.c.l.b16 %v65
    %v113 = vunpack.c.l.b16 %v66
    %v114 = vunpack.c.l.b16 %v67
    %v115 = vpack.c.b16 %v100, %v99
    %v116 = vpack.c.b16 %v102, %v101
    %v117 = vpack.c.b16 %v104, %v103
    %v118 = vpack.c.b16 %v106, %v105
    %v119 = vpack.c.b16 %v108, %v107
    %v120 = vpack.c.b16 %v110, %v109
    %v121 = vpack.c.b16 %v112, %v111
    %v122 = vpack.c.b16 %v114, %v113
    %131 = vmatprep.subr.bf16.mxu0 0
    %132 = vmatpush1.bf16.msra.mxu0 %v115
    %133 = vmatprep.subr.bf16.mxu0 0
    %134 = vmatpush1.bf16.msra.mxu0 %v116
    %135 = vmatprep.subr.bf16.mxu0 0
    %136 = vmatpush1.bf16.msra.mxu0 %v117
    %137 = vmatprep.subr.bf16.mxu0 0
    %138 = vmatpush1.bf16.msra.mxu0 %v118
    %139 = vmatprep.subr.bf16.mxu0 0
    %140 = vmatpush1.bf16.msra.mxu0 %v119
    %141 = vmatprep.subr.bf16.mxu0 0
    %142 = vmatpush1.bf16.msra.mxu0 %v120
    %143 = vmatprep.subr.bf16.mxu0 0
    %144 = vmatpush1.bf16.msra.mxu0 %v121
    %145 = vmatprep.subr.bf16.mxu0 0
    %146 = vmatpush1.bf16.msra.mxu0 %v122
    %147 = vmatprep.subr.bf16.mxu0 0
    %148 = vmatpush1.bf16.msra.mxu0 0
    %149 = vmatprep.subr.bf16.mxu0 0
    %150 = vmatpush1.bf16.msra.mxu0 0
    %151 = vmatprep.subr.bf16.mxu0 0
    %152 = vmatpush1.bf16.msra.mxu0 0
    %153 = vmatprep.subr.bf16.mxu0 0
    %154 = vmatpush1.bf16.msra.mxu0 0
    %155 = vmatprep.subr.bf16.mxu0 0
    %156 = vmatpush1.bf16.msra.mxu0 0
    %157 = vmatprep.subr.bf16.mxu0 0
    %158 = vmatpush1.bf16.msra.mxu0 0
    %159 = vmatprep.subr.bf16.mxu0 0
    %160 = vmatpush1.bf16.msra.mxu0 0
    %161 = vmatprep.subr.bf16.mxu0 0
    %162 = vmatpush1.bf16.msra.mxu0 0
    %163 = vmatprep.mubr.bf16.mxu0 0
    %164 = vmatmul.mubr.bf16.gmra.mrb[0].mxu0 %v81
    %v165 = vpop.f32.mrb[0].mxu0
    %v166 = vadd.f32 %v75, %v165
    %v167 = vpop.f32.mrb[0].mxu0
    %v168 = vpop.f32.mrb[0].mxu0
    %v169 = vadd.f32 %v75, %v168
    %v170 = vpop.f32.mrb[0].mxu0
    %171 = vdwg.mxu0
    %v172 = vtanh.pop %v166
    %v173 = vtanh.pop %v169
    %174 = vadd.xlane.f32.xlu0 %v172
    %v175 = vpop.xlane.xlu0 %174
    %176 = vadd.xlane.f32.xlu0 %v173
    %v177 = vpop.xlane.xlu0 %176
    %v178 = vmul.f32 %v175, 0.0078125
    %v179 = vmul.f32 %v177, 0.0078125
    %v180 = vmul.f32 %v172, %v172
    %v181 = vmul.f32 %v173, %v173
    %182 = vadd.xlane.f32.xlu0 %v180
    %v183 = vpop.xlane.xlu0 %182
    %184 = vadd.xlane.f32.xlu0 %v181
    %v185 = vpop.xlane.xlu0 %184
    %v186 = vmul.f32 %v183, 0.0078125
    %v187 = vmul.f32 %v185, 0.0078125
    %v188 = vmul.f32 %v178, %v178
    %v189 = vmul.f32 %v179, %v179
    %v190 = vsub.f32 %v186, %v188
    %v191 = vsub.f32 %v187, %v189
    %v192 = vmax.f32 %v190, 0.0
    %v193 = vmax.f32 %v191, 0.0
    %v194 = vsub.f32 %v172, %v178
    %v195 = vsub.f32 %v173, %v179
    %v196 = vadd.f32 %v192, 1e-05
    %v197 = vadd.f32 %v193, 1e-05
    %v198 = vrsqrt.pop %v196
    %v199 = vrsqrt.pop %v197
    %v200 = vmul.f32 %v194, %v198
    %v201 = vmul.f32 %v195, %v199
    %v203 = vlaneseq
    %v204 = vshrl.u32 %v203, 7
    %v205 = vsub.s32 0, %v204
    %v206 = vrot.slane %v69, %v205
    %v208 = vmul.f32 %v200, %v206
    %v209 = vmul.f32 %v201, %v206
    %v211 = vlaneseq
    %v212 = vshrl.u32 %v211, 7
    %v213 = vsub.s32 0, %v212
    %v214 = vrot.slane %v70, %v213
    %v216 = vadd.f32 %v208, %v214
    %v217 = vadd.f32 %v209, %v214
    %218 = vst [vmem:[#allocation7] sm:$0xff] %v216
    %219 = vst [vmem:[#allocation7 + $0x8] sm:$0xff] %v217
    // Predicated region
    $region30: #{tpu_custom_call.1} parent=1 // pred_check
      _
    $region31: #{tpu_custom_call.1} parent=1 // pred_check_branch
      %221 = sbr.rel (0) target = $region33
    $region32: #{tpu_custom_call.1} parent=1 // pred_region
      %s223 = ssub.s32 256, 256
      %224 = vsyncadd [#allocation4], %s223
      %s225 = sshll.u32 [#allocation7], 4
      %s226 = int_to_ptr.vmem [resolvable:$true] %s225
      %231 = dma.vmem_to_hbm [thread:$0]  %s226, 256, %s5, [#allocation4], 128, 128, 8
    $region33: #{tpu_custom_call.1} parent=1 // pred_fallthru
      _
    // Predicated region
    $region34: #{tpu_custom_call.1} parent=1 // pred_check
      _
    $region35: #{tpu_custom_call.1} parent=1 // pred_check_branch
      %233 = sbr.rel (0) target = $region37
    $region36: #{tpu_custom_call.1} parent=1 // pred_region
      %234 = dma.done [#allocation4], 256
    $region37: #{tpu_custom_call.1} parent=1 // pred_fallthru
      _
    %235 = vsyncpa [#allocation3], 1
    %236 = vsyncpa [#allocation6], 1
    %237 = vsyncpa [#allocation4], 1

</llo_original>
